<compile_context>
chip_gen: v6e
topology: v6e:2x2x1
jax: 0.10.0
libtpu: 0.0.40
codegen_flags: <defaults>
</compile_context>

<pallas_src>
import jax
import jax.numpy as jnp
from jax.experimental import pallas as pl
from jax.experimental.pallas import tpu as pltpu

BN_EPS = 1e-5
LANE = 128


def _round_up(n, m):
    return ((n + m - 1) // m) * m


def _gelu_tanh(x):
    # tanh-approximate GELU: tanh lowers to the EUP (its own VLIW slot), whereas
    # the erf form becomes a long VALU polynomial.
    return jax.nn.gelu(x, approximate=True)


def _gelu_exact(x):
    # exact (erf-based) GELU, matching torch.nn.GELU() default — reference only
    return 0.5 * x * (1.0 + jax.lax.erf(x * 0.7071067811865476))


# --------------------------------------------------------------------------
# Fused classifier kernel: dense1(+BN1 folded) -> GELU -> dense2(+BN2 folded,
# lane-padded) -> GELU -> dense3 (output padded to 128 lanes)
# --------------------------------------------------------------------------
def classifier_kernel(x_ref, w1_ref, b1_ref, w2_ref, b2_ref, w3_ref, b3_ref,
                      out_ref):
    x = x_ref[...]
    if x.dtype != jnp.bfloat16:          # prefer a bf16 producer upstream;
        x = x.astype(jnp.bfloat16)       # cast in-kernel only if handed f32
    h = jnp.dot(x, w1_ref[...],
                preferred_element_type=jnp.float32) + b1_ref[...]
    h = _gelu_tanh(h)                                          # f32, EUP tanh
    h = jnp.dot(h.astype(jnp.bfloat16), w2_ref[...],
                preferred_element_type=jnp.float32) + b2_ref[...]
    h = _gelu_tanh(h)
    out_ref[...] = jnp.dot(h.astype(jnp.bfloat16), w3_ref[...],
                           preferred_element_type=jnp.float32) + b3_ref[...]


# --------------------------------------------------------------------------
# Host-side parameter preparation:
#   * fold eval BN into the linears (f32),
#   * zero-pad the H/2 hidden width and the final head to multiples of 128,
#   * cast weights to bf16 (MXU inputs), keep biases f32.
# --------------------------------------------------------------------------
def _fold_bn_into_linear(w, b, gamma, beta, rmean, rvar, eps=BN_EPS):
    scale = gamma / jnp.sqrt(rvar + eps)          # (N,)
    w_f = w * scale[None, :]                      # column-wise scaling
    b_f = (b - rmean) * scale + beta
    return w_f, b_f


def prepare_params(p, num_label):
    H = p["w1"].shape[0]
    H2 = p["w2"].shape[1]

    w1, b1 = _fold_bn_into_linear(p["w1"], p["b1"], p["g1"], p["be1"],
                                  p["rm1"], p["rv1"])
    w2, b2 = _fold_bn_into_linear(p["w2"], p["b2"], p["g2"], p["be2"],
                                  p["rm2"], p["rv2"])

    h2_pad = _round_up(H2, LANE)                  # lane-dense middle layer
    n_pad = _round_up(num_label, LANE)            # lane-dense head

    w2p = jnp.zeros((H, h2_pad), jnp.float32).at[:, :H2].set(w2)
    b2p = jnp.zeros((h2_pad,), jnp.float32).at[:H2].set(b2)
    # zero rows in w3 for the padded K range -> padded channels contribute 0
    w3p = jnp.zeros((h2_pad, n_pad), jnp.float32).at[:H2, :num_label].set(p["w3"])
    b3p = jnp.zeros((n_pad,), jnp.float32).at[:num_label].set(p["b3"])

    return dict(
        w1=w1.astype(jnp.bfloat16), b1=b1.reshape(1, -1).astype(jnp.float32),
        w2=w2p.astype(jnp.bfloat16), b2=b2p.reshape(1, -1).astype(jnp.float32),
        w3=w3p.astype(jnp.bfloat16), b3=b3p.reshape(1, -1).astype(jnp.float32),
        n_pad=n_pad,
    )


# --------------------------------------------------------------------------
# Wrapper: batch-blocked pallas_call (single grid step at small B),
# single-buffered grid-invariant weights, lane-dense output, slice back.
# --------------------------------------------------------------------------
def simple_classifier(x, prep, num_label, block_b=256):
    B, H = x.shape
    n_pad = prep["n_pad"]

    # Batch block: whole batch in one step when it fits, else up to 256 rows
    # per step (MXU-shaped on v6e/v7x, >=128 on v5e). Sublane-align to 8.
    bb = min(_round_up(B, 8), _round_up(block_b, 8))
    pad_b = (-B) % bb
    if pad_b:
        x = jnp.concatenate([x, jnp.zeros((pad_b, H), x.dtype)], axis=0)
    Bp = x.shape[0]

    def _weight_spec(arr):
        # Grid-invariant operand: fetched once, single-buffered (no point
        # double-buffering a block whose index_map is constant).
        return pl.BlockSpec(arr.shape, lambda i: (0, 0),
                            pipeline_mode=pl.Buffered(1))

    out = pl.pallas_call(
        classifier_kernel,
        out_shape=jax.ShapeDtypeStruct((Bp, n_pad), jnp.float32),
        grid=(Bp // bb,),
        in_specs=[
            pl.BlockSpec((bb, H), lambda i: (i, 0)),   # activations (pipelined)
            _weight_spec(prep["w1"]), _weight_spec(prep["b1"]),
            _weight_spec(prep["w2"]), _weight_spec(prep["b2"]),
            _weight_spec(prep["w3"]), _weight_spec(prep["b3"]),
        ],
        out_specs=pl.BlockSpec((bb, n_pad), lambda i: (i, 0)),  # lane-dense vst
        compiler_params=pltpu.CompilerParams(
            dimension_semantics=("parallel",),   # megacore only when grid > 1
            vmem_limit_bytes=32 * 1024 * 1024,   # leaves headroom on v7x 64 MiB
        ),
    )(x, prep["w1"], prep["b1"], prep["w2"], prep["b2"],
      prep["w3"], prep["b3"])
    return out[:B, :num_label]


# --------------------------------------------------------------------------
# Plain-JAX f32 reference (unfolded BN, exact GELU) for correctness check
# --------------------------------------------------------------------------
def reference_forward(x, p):
    def bn(h, g, be, rm, rv):
        return (h - rm) / jnp.sqrt(rv + BN_EPS) * g + be

    h = x @ p["w1"] + p["b1"]
    h = bn(h, p["g1"], p["be1"], p["rm1"], p["rv1"])
    h = _gelu_exact(h)
    h = h @ p["w2"] + p["b2"]
    h = bn(h, p["g2"], p["be2"], p["rm2"], p["rv2"])
    h = _gelu_exact(h)
    return h @ p["w3"] + p["b3"]


# --------------------------------------------------------------------------
# Deterministic parameter init (shapes match the PyTorch module)
# --------------------------------------------------------------------------
def init_params(key, H, num_label):
    H2 = H // 2
    keys = iter(jax.random.split(key, 32))

    def nrm(shape, scale):
        return (scale * jax.random.normal(next(keys), shape)).astype(jnp.float32)

    return dict(
        w1=nrm((H, H), 0.05), b1=nrm((H,), 0.05),
        g1=1.0 + nrm((H,), 0.1), be1=nrm((H,), 0.1),
        rm1=nrm((H,), 0.1), rv1=1.0 + jnp.abs(nrm((H,), 0.1)),
        w2=nrm((H, H2), 0.05), b2=nrm((H2,), 0.05),
        g2=1.0 + nrm((H2,), 0.1), be2=nrm((H2,), 0.1),
        rm2=nrm((H2,), 0.1), rv2=1.0 + jnp.abs(nrm((H2,), 0.1)),
        w3=nrm((H2, num_label), 0.05), b3=nrm((num_label,), 0.05),
    )


if __name__ == "__main__":
    B, H, NUM_LABEL = 16, 128, 4          # batch, hidden, labels (hidden//2 = 64)

    key = jax.random.PRNGKey(0)
    k_par, k_x = jax.random.split(key)
    params = init_params(k_par, H, NUM_LABEL)
    features = jax.random.normal(k_x, (B, H), jnp.float32)

    prep = prepare_params(params, NUM_LABEL)
    logits = simple_classifier(features, prep, NUM_LABEL)
    jax.block_until_ready(logits)

    ref = reference_forward(features, params)
    assert logits.shape == (B, NUM_LABEL)
    max_err = float(jnp.max(jnp.abs(logits - ref)))
    # bf16 MXU inputs + tanh-approx GELU vs. f32 exact reference
    assert max_err < 3e-2, f"max_err={max_err}"

    print("KERNEL_OK")
</pallas_src>

<mosaic_0001>
module attributes {stable_mosaic.version = 11 : i64} {
  func.func @classifier_kernel(%arg0: i32, %arg1: memref<16x128xf32, #tpu.memory_space<vmem>>, %arg2: memref<128x128xbf16, #tpu.memory_space<vmem>>, %arg3: memref<1x128xf32, #tpu.memory_space<vmem>>, %arg4: memref<128x128xbf16, #tpu.memory_space<vmem>>, %arg5: memref<1x128xf32, #tpu.memory_space<vmem>>, %arg6: memref<128x128xbf16, #tpu.memory_space<vmem>>, %arg7: memref<1x128xf32, #tpu.memory_space<vmem>>, %arg8: memref<16x128xf32, #tpu.memory_space<vmem>>) attributes {dimension_semantics = [#tpu.dimension_semantics<parallel>], iteration_bounds = array<i64: 1>, scalar_prefetch = 0 : i64, scratch_operands = 0 : i64, tpu.core_type = #tpu.core_type<tc>, window_params = [{transform_indices = @transform_0, window_bounds = array<i64: 16, 128>}, {pipeline_mode = #tpu.pipeline_mode<synchronous>, transform_indices = @transform_1, window_bounds = array<i64: 128, 128>}, {pipeline_mode = #tpu.pipeline_mode<synchronous>, transform_indices = @transform_2, window_bounds = array<i64: 1, 128>}, {pipeline_mode = #tpu.pipeline_mode<synchronous>, transform_indices = @transform_3, window_bounds = array<i64: 128, 128>}, {pipeline_mode = #tpu.pipeline_mode<synchronous>, transform_indices = @transform_4, window_bounds = array<i64: 1, 128>}, {pipeline_mode = #tpu.pipeline_mode<synchronous>, transform_indices = @transform_5, window_bounds = array<i64: 128, 128>}, {pipeline_mode = #tpu.pipeline_mode<synchronous>, transform_indices = @transform_6, window_bounds = array<i64: 1, 128>}, {transform_indices = @transform_7, window_bounds = array<i64: 16, 128>}]} {
    %c0 = arith.constant 0 : index
    %c0_0 = arith.constant 0 : index
    %0 = vector.load %arg1[%c0, %c0_0] : memref<16x128xf32, #tpu.memory_space<vmem>>, vector<16x128xf32>
    %1 = arith.truncf %0 : vector<16x128xf32> to vector<16x128xbf16>
    %c0_1 = arith.constant 0 : index
    %c0_2 = arith.constant 0 : index
    %2 = vector.load %arg2[%c0_1, %c0_2] : memref<128x128xbf16, #tpu.memory_space<vmem>>, vector<128x128xbf16>
    %cst = arith.constant dense<0.000000e+00> : vector<16x128xf32>
    %3 = tpu.matmul %1, %2, %cst {dimension_numbers = #tpu.dot_dimension_numbers<[1], [0], [0], [1], [0, 0, 1, 1], [], []>} : vector<16x128xbf16>, vector<128x128xbf16>, vector<16x128xf32> -> vector<16x128xf32>
    %c0_3 = arith.constant 0 : index
    %c0_4 = arith.constant 0 : index
    %4 = vector.load %arg3[%c0_3, %c0_4] : memref<1x128xf32, #tpu.memory_space<vmem>>, vector<1x128xf32>
    %5 = vector.broadcast %4 : vector<1x128xf32> to vector<16x128xf32>
    %6 = arith.addf %3, %5 : vector<16x128xf32>
    %7 = arith.mulf %6, %6 : vector<16x128xf32>
    %8 = arith.mulf %6, %7 : vector<16x128xf32>
    %cst_5 = arith.constant 4.471500e-02 : f32
    %9 = vector.broadcast %cst_5 : f32 to vector<16x128xf32>
    %10 = arith.mulf %9, %8 : vector<16x128xf32>
    %11 = arith.addf %6, %10 : vector<16x128xf32>
    %cst_6 = arith.constant 0.797884583 : f32
    %12 = vector.broadcast %cst_6 : f32 to vector<16x128xf32>
    %13 = arith.mulf %12, %11 : vector<16x128xf32>
    %14 = math.tanh %13 : vector<16x128xf32>
    %cst_7 = arith.constant 1.000000e+00 : f32
    %15 = vector.broadcast %cst_7 : f32 to vector<16x128xf32>
    %16 = arith.addf %15, %14 : vector<16x128xf32>
    %cst_8 = arith.constant 5.000000e-01 : f32
    %17 = vector.broadcast %cst_8 : f32 to vector<16x128xf32>
    %18 = arith.mulf %17, %16 : vector<16x128xf32>
    %19 = arith.mulf %6, %18 : vector<16x128xf32>
    %20 = arith.truncf %19 : vector<16x128xf32> to vector<16x128xbf16>
    %c0_9 = arith.constant 0 : index
    %c0_10 = arith.constant 0 : index
    %21 = vector.load %arg4[%c0_9, %c0_10] : memref<128x128xbf16, #tpu.memory_space<vmem>>, vector<128x128xbf16>
    %cst_11 = arith.constant dense<0.000000e+00> : vector<16x128xf32>
    %22 = tpu.matmul %20, %21, %cst_11 {dimension_numbers = #tpu.dot_dimension_numbers<[1], [0], [0], [1], [0, 0, 1, 1], [], []>} : vector<16x128xbf16>, vector<128x128xbf16>, vector<16x128xf32> -> vector<16x128xf32>
    %c0_12 = arith.constant 0 : index
    %c0_13 = arith.constant 0 : index
    %23 = vector.load %arg5[%c0_12, %c0_13] : memref<1x128xf32, #tpu.memory_space<vmem>>, vector<1x128xf32>
    %24 = vector.broadcast %23 : vector<1x128xf32> to vector<16x128xf32>
    %25 = arith.addf %22, %24 : vector<16x128xf32>
    %26 = arith.mulf %25, %25 : vector<16x128xf32>
    %27 = arith.mulf %25, %26 : vector<16x128xf32>
    %cst_14 = arith.constant 4.471500e-02 : f32
    %28 = vector.broadcast %cst_14 : f32 to vector<16x128xf32>
    %29 = arith.mulf %28, %27 : vector<16x128xf32>
    %30 = arith.addf %25, %29 : vector<16x128xf32>
    %cst_15 = arith.constant 0.797884583 : f32
    %31 = vector.broadcast %cst_15 : f32 to vector<16x128xf32>
    %32 = arith.mulf %31, %30 : vector<16x128xf32>
    %33 = math.tanh %32 : vector<16x128xf32>
    %cst_16 = arith.constant 1.000000e+00 : f32
    %34 = vector.broadcast %cst_16 : f32 to vector<16x128xf32>
    %35 = arith.addf %34, %33 : vector<16x128xf32>
    %cst_17 = arith.constant 5.000000e-01 : f32
    %36 = vector.broadcast %cst_17 : f32 to vector<16x128xf32>
    %37 = arith.mulf %36, %35 : vector<16x128xf32>
    %38 = arith.mulf %25, %37 : vector<16x128xf32>
    %39 = arith.truncf %38 : vector<16x128xf32> to vector<16x128xbf16>
    %c0_18 = arith.constant 0 : index
    %c0_19 = arith.constant 0 : index
    %40 = vector.load %arg6[%c0_18, %c0_19] : memref<128x128xbf16, #tpu.memory_space<vmem>>, vector<128x128xbf16>
    %cst_20 = arith.constant dense<0.000000e+00> : vector<16x128xf32>
    %41 = tpu.matmul %39, %40, %cst_20 {dimension_numbers = #tpu.dot_dimension_numbers<[1], [0], [0], [1], [0, 0, 1, 1], [], []>} : vector<16x128xbf16>, vector<128x128xbf16>, vector<16x128xf32> -> vector<16x128xf32>
    %c0_21 = arith.constant 0 : index
    %c0_22 = arith.constant 0 : index
    %42 = vector.load %arg7[%c0_21, %c0_22] : memref<1x128xf32, #tpu.memory_space<vmem>>, vector<1x128xf32>
    %43 = vector.broadcast %42 : vector<1x128xf32> to vector<16x128xf32>
    %44 = arith.addf %41, %43 : vector<16x128xf32>
    %c0_23 = arith.constant 0 : index
    %c0_24 = arith.constant 0 : index
    %45 = vector.load %arg8[%c0_23, %c0_24] : memref<16x128xf32, #tpu.memory_space<vmem>>, vector<16x128xf32>
    tpu.vector_store %arg8[%c0_23, %c0_24], %44 {strides = array<i32>} : memref<16x128xf32, #tpu.memory_space<vmem>>, vector<16x128xf32>,
    return
  }
  func.func @transform_0(%arg0: i32) -> (i32, i32) {
    %c0_i32 = arith.constant 0 : i32
    %c0_i32_0 = arith.constant 0 : i32
    return %arg0, %c0_i32 : i32, i32
  }
  func.func @transform_1(%arg0: i32) -> (i32, i32) {
    %c0_i32 = arith.constant 0 : i32
    %c0_i32_0 = arith.constant 0 : i32
    %c0_i32_1 = arith.constant 0 : i32
    return %c0_i32, %c0_i32_0 : i32, i32
  }
  func.func @transform_2(%arg0: i32) -> (i32, i32) {
    %c0_i32 = arith.constant 0 : i32
    %c0_i32_0 = arith.constant 0 : i32
    %c0_i32_1 = arith.constant 0 : i32
    return %c0_i32, %c0_i32_0 : i32, i32
  }
  func.func @transform_3(%arg0: i32) -> (i32, i32) {
    %c0_i32 = arith.constant 0 : i32
    %c0_i32_0 = arith.constant 0 : i32
    %c0_i32_1 = arith.constant 0 : i32
    return %c0_i32, %c0_i32_0 : i32, i32
  }
  func.func @transform_4(%arg0: i32) -> (i32, i32) {
    %c0_i32 = arith.constant 0 : i32
    %c0_i32_0 = arith.constant 0 : i32
    %c0_i32_1 = arith.constant 0 : i32
    return %c0_i32, %c0_i32_0 : i32, i32
  }
  func.func @transform_5(%arg0: i32) -> (i32, i32) {
    %c0_i32 = arith.constant 0 : i32
    %c0_i32_0 = arith.constant 0 : i32
    %c0_i32_1 = arith.constant 0 : i32
    return %c0_i32, %c0_i32_0 : i32, i32
  }
  func.func @transform_6(%arg0: i32) -> (i32, i32) {
    %c0_i32 = arith.constant 0 : i32
    %c0_i32_0 = arith.constant 0 : i32
    %c0_i32_1 = arith.constant 0 : i32
    return %c0_i32, %c0_i32_0 : i32, i32
  }
  func.func @transform_7(%arg0: i32) -> (i32, i32) {
    %c0_i32 = arith.constant 0 : i32
    %c0_i32_0 = arith.constant 0 : i32
    return %arg0, %c0_i32 : i32, i32
  }
}

</mosaic_0001>

<llo_original>
// kernel: tpu_custom_call.1
$region0: #{tpu_custom_call.1}
  #allocation0 [shape = 'u32[]', space=smem, size = 0x4, offset = 0x4, fixed_abs, tag = 'smem constant byte address 0x4 - core index']
  #allocation1 [shape = 'u32[144,128]{1,0:T(1,128)}', space=vmem, size = 0x12000, scoped, tag = 'internal scratch']
  %s0 = inlined_call_operand.hbm [shape: f32[16,128], index: 0, kind: input, shape index: {}]
  %s1 = inlined_call_operand.hbm [shape: bf16[128,128], index: 1, kind: input, shape index: {}]
  %s2 = inlined_call_operand.vmem [shape: f32[1,128], index: 2, kind: input, shape index: {}]
  %s3 = inlined_call_operand.hbm [shape: bf16[128,128], index: 3, kind: input, shape index: {}]
  %s4 = inlined_call_operand.vmem [shape: f32[1,128], index: 4, kind: input, shape index: {}]
  %s5 = inlined_call_operand.hbm [shape: bf16[128,128], index: 5, kind: input, shape index: {}]
  %s6 = inlined_call_operand.vmem [shape: f32[1,128], index: 6, kind: input, shape index: {}]
  %s7 = inlined_call_operand.hbm [shape: f32[16,128], index: 7, kind: output, shape index: {}]
  %s8 = sld [smem:[#allocation0]]
  $region54: #{tpu_custom_call.1} parent=0
    _
  %s10 = ssub.s32 1, %s8
  %s11 = scalar_select 0, %s10, %s8
  $region1: #{tpu_custom_call.1} parent=0
    #allocation2 [shape = 'u8[8192]{0}', space=vmem, size = 0x2000, scoped, tag = 'input window, operand 0, single buffered']
    #allocation3 [shape = 's32[1]{0}', space=sflag, size = 0x4, scoped, tag = 'scoped memory for tpu_custom_call.1']
    #allocation4 [shape = 's32[1]{0}', space=sflag, size = 0x4, scoped, tag = 'scoped memory for tpu_custom_call.1']
    #allocation5 [shape = 'u8[32768]{0}', space=vmem, size = 0x8000, scoped, tag = 'input window, operand 1, single buffered']
    #allocation6 [shape = 's32[1]{0}', space=sflag, size = 0x4, scoped, tag = 'scoped memory for tpu_custom_call.1']
    #allocation7 [shape = 'u8[32768]{0}', space=vmem, size = 0x8000, scoped, tag = 'input window, operand 3, single buffered']
    #allocation8 [shape = 'u8[32768]{0}', space=vmem, size = 0x8000, scoped, tag = 'input window, operand 5, single buffered']
    #allocation9 [shape = 's32[1]{0}', space=sflag, size = 0x4, scoped, tag = 'scoped memory for tpu_custom_call.1']
    #allocation10 [shape = 'u8[8192]{0}', space=vmem, size = 0x2000, scoped, tag = 'output window, operand 0, single buffered']
    %12 = vsyncpa [#allocation3], 0
    %13 = vsyncpa [#allocation6], 0
    %14 = vsyncpa [#allocation9], 0
    %15 = vsyncpa [#allocation4], 0
    // Predicated region
    $region2: #{tpu_custom_call.1} parent=1 // pred_check
      _
    $region3: #{tpu_custom_call.1} parent=1 // pred_check_branch
      %17 = sbr.rel (0) target = $region5
    $region4: #{tpu_custom_call.1} parent=1 // pred_region
      %s19 = ssub.s32 256, 256
      %20 = vsyncadd [#allocation3], %s19
      %s21 = sshll.u32 [#allocation2], 4
      %s22 = int_to_ptr.vmem [resolvable:$true] %s21
      %27 = dma.hbm_to_vmem [thread:$0]  %s0, 256, %s22, [#allocation3], 128, 128, 8
    $region5: #{tpu_custom_call.1} parent=1 // pred_fallthru
      _
    // Predicated region
    $region6: #{tpu_custom_call.1} parent=1 // pred_check
      _
    $region7: #{tpu_custom_call.1} parent=1 // pred_check_branch
      %29 = sbr.rel (0) target = $region9
    $region8: #{tpu_custom_call.1} parent=1 // pred_region
      %s31 = ssub.s32 1024, 1024
      %32 = vsyncadd [#allocation6], %s31
      %s33 = sshll.u32 [#allocation5], 4
      %s34 = int_to_ptr.vmem [resolvable:$true] %s33
      %39 = dma.hbm_to_vmem [thread:$0]  %s1, 1024, %s34, [#allocation6], 64, 64, 4
    $region9: #{tpu_custom_call.1} parent=1 // pred_fallthru
      _
    // Predicated region
    $region10: #{tpu_custom_call.1} parent=1 // pred_check
      _
    $region11: #{tpu_custom_call.1} parent=1 // pred_check_branch
      %41 = sbr.rel (0) target = $region13
    $region12: #{tpu_custom_call.1} parent=1 // pred_region
      _
    $region13: #{tpu_custom_call.1} parent=1 // pred_fallthru
      _
    // Predicated region
    $region14: #{tpu_custom_call.1} parent=1 // pred_check
      _
    $region15: #{tpu_custom_call.1} parent=1 // pred_check_branch
      %43 = sbr.rel (0) target = $region17
    $region16: #{tpu_custom_call.1} parent=1 // pred_region
      %s45 = ssub.s32 1024, 1024
      %46 = vsyncadd [#allocation6], %s45
      %s47 = sshll.u32 [#allocation7], 4
      %s48 = int_to_ptr.vmem [resolvable:$true] %s47
      %53 = dma.hbm_to_vmem [thread:$0]  %s3, 1024, %s48, [#allocation6], 64, 64, 4
    $region17: #{tpu_custom_call.1} parent=1 // pred_fallthru
      _
    // Predicated region
    $region18: #{tpu_custom_call.1} parent=1 // pred_check
      _
    $region19: #{tpu_custom_call.1} parent=1 // pred_check_branch
      %55 = sbr.rel (0) target = $region21
    $region20: #{tpu_custom_call.1} parent=1 // pred_region
      _
    $region21: #{tpu_custom_call.1} parent=1 // pred_fallthru
      _
    // Predicated region
    $region22: #{tpu_custom_call.1} parent=1 // pred_check
      _
    $region23: #{tpu_custom_call.1} parent=1 // pred_check_branch
      %57 = sbr.rel (0) target = $region25
    $region24: #{tpu_custom_call.1} parent=1 // pred_region
      %s59 = ssub.s32 1024, 1024
      %60 = vsyncadd [#allocation9], %s59
      %s61 = sshll.u32 [#allocation8], 4
      %s62 = int_to_ptr.vmem [resolvable:$true] %s61
      %67 = dma.hbm_to_vmem [thread:$0]  %s5, 1024, %s62, [#allocation9], 64, 64, 4
    $region25: #{tpu_custom_call.1} parent=1 // pred_fallthru
      _
    // Predicated region
    $region26: #{tpu_custom_call.1} parent=1 // pred_check
      _
    $region27: #{tpu_custom_call.1} parent=1 // pred_check_branch
      %69 = sbr.rel (0) target = $region29
    $region28: #{tpu_custom_call.1} parent=1 // pred_region
      _
    $region29: #{tpu_custom_call.1} parent=1 // pred_fallthru
      _
    // Predicated region
    $region30: #{tpu_custom_call.1} parent=1 // pred_check
      _
    $region31: #{tpu_custom_call.1} parent=1 // pred_check_branch
      %71 = sbr.rel (0) target = $region33
    $region32: #{tpu_custom_call.1} parent=1 // pred_region
      %72 = dma.done [#allocation3], 256
    $region33: #{tpu_custom_call.1} parent=1 // pred_fallthru
      _
    // Predicated region
    $region34: #{tpu_custom_call.1} parent=1 // pred_check
      _
    $region35: #{tpu_custom_call.1} parent=1 // pred_check_branch
      %74 = sbr.rel (0) target = $region37
    $region36: #{tpu_custom_call.1} parent=1 // pred_region
      %75 = dma.done [#allocation6], 1024
    $region37: #{tpu_custom_call.1} parent=1 // pred_fallthru
      _
    // Predicated region
    $region38: #{tpu_custom_call.1} parent=1 // pred_check
      _
    $region39: #{tpu_custom_call.1} parent=1 // pred_check_branch
      %77 = sbr.rel (0) target = $region41
    $region40: #{tpu_custom_call.1} parent=1 // pred_region
      %78 = dma.done [#allocation6], 1024
    $region41: #{tpu_custom_call.1} parent=1 // pred_fallthru
      _
    // Predicated region
    $region42: #{tpu_custom_call.1} parent=1 // pred_check
      _
    $region43: #{tpu_custom_call.1} parent=1 // pred_check_branch
      %80 = sbr.rel (0) target = $region45
    $region44: #{tpu_custom_call.1} parent=1 // pred_region
      %81 = dma.done [#allocation9], 1024
    $region45: #{tpu_custom_call.1} parent=1 // pred_fallthru
      _
    %v83 = vld [vmem:[#allocation2] sm:$0xff]
    %v84 = vld [vmem:[#allocation2 + $0x8] sm:$0xff]
    %v85 = vpack.c.bf16 %v84, %v83
    %v86 = vld [vmem:[#allocation5] sm:$0xf]
    %v87 = vld [vmem:[#allocation5 + $0x4] sm:$0xf]
    %v88 = vld [vmem:[#allocation5 + $0x8] sm:$0xf]
    %v89 = vld [vmem:[#allocation5 + $0xc] sm:$0xf]
    %v90 = vld [vmem:[#allocation5 + $0x10] sm:$0xf]
    %v91 = vld [vmem:[#allocation5 + $0x14] sm:$0xf]
    %v92 = vld [vmem:[#allocation5 + $0x18] sm:$0xf]
    %v93 = vld [vmem:[#allocation5 + $0x1c] sm:$0xf]
    %v94 = vld [vmem:[#allocation5 + $0x20] sm:$0xf]
    %v95 = vld [vmem:[#allocation5 + $0x24] sm:$0xf]
    %v96 = vld [vmem:[#allocation5 + $0x28] sm:$0xf]
    %v97 = vld [vmem:[#allocation5 + $0x2c] sm:$0xf]
    %v98 = vld [vmem:[#allocation5 + $0x30] sm:$0xf]
    %v99 = vld [vmem:[#allocation5 + $0x34] sm:$0xf]
    %v100 = vld [vmem:[#allocation5 + $0x38] sm:$0xf]
    %v101 = vld [vmem:[#allocation5 + $0x3c] sm:$0xf]
    %v102 = vld [vmem:[%s2] sm:$0x1]
    %v104 = vlaneseq
    %v105 = vshrl.u32 %v104, 7
    %v106 = vsub.s32 0, %v105
    %v107 = vrot.slane %v102, %v106
    %v125 = vunpack.c.l.b16 %v86
    %v126 = vunpack.c.l.b16 %v87
    %v127 = vunpack.c.l.b16 %v88
    %v128 = vunpack.c.l.b16 %v89
    %v129 = vunpack.c.l.b16 %v90
    %v130 = vunpack.c.l.b16 %v91
    %v131 = vunpack.c.l.b16 %v92
    %v132 = vunpack.c.l.b16 %v93
    %v133 = vunpack.c.l.b16 %v94
    %v134 = vunpack.c.l.b16 %v95
    %v135 = vunpack.c.l.b16 %v96
    %v136 = vunpack.c.l.b16 %v97
    %v137 = vunpack.c.l.b16 %v98
    %v138 = vunpack.c.l.b16 %v99
    %v139 = vunpack.c.l.b16 %v100
    %v140 = vunpack.c.l.b16 %v101
    %v141 = vpack.c.b16 %v126, %v125
    %v142 = vpack.c.b16 %v128, %v127
    %v143 = vpack.c.b16 %v130, %v129
    %v144 = vpack.c.b16 %v132, %v131
    %v145 = vpack.c.b16 %v134, %v133
    %v146 = vpack.c.b16 %v136, %v135
    %v147 = vpack.c.b16 %v138, %v137
    %v148 = vpack.c.b16 %v140, %v139
    %157 = vmatprep.subr.bf16.mxu0 0
    %158 = vmatpush1.bf16.msra.mxu0 %v148
    %159 = vmatprep.subr.bf16.mxu0 0
    %160 = vmatpush1.bf16.msra.mxu0 %v147
    %161 = vmatprep.subr.bf16.mxu0 0
    %162 = vmatpush1.bf16.msra.mxu0 %v146
    %163 = vmatprep.subr.bf16.mxu0 0
    %164 = vmatpush1.bf16.msra.mxu0 %v145
    %165 = vmatprep.subr.bf16.mxu0 0
    %166 = vmatpush1.bf16.msra.mxu0 %v144
    %167 = vmatprep.subr.bf16.mxu0 0
    %168 = vmatpush1.bf16.msra.mxu0 %v143
    %169 = vmatprep.subr.bf16.mxu0 0
    %170 = vmatpush1.bf16.msra.mxu0 %v142
    %171 = vmatprep.subr.bf16.mxu0 0
    %172 = vmatpush1.bf16.msra.mxu0 %v141
    %173 = vmatprep.subr.bf16.mxu0 0
    %174 = vmatpush2.bf16.msra.mxu0 0
    %175 = vmatprep.subr.bf16.mxu0 0
    %176 = vmatpush2.bf16.msra.mxu0 0
    %177 = vmatprep.subr.bf16.mxu0 0
    %178 = vmatpush2.bf16.msra.mxu0 0
    %179 = vmatprep.subr.bf16.mxu0 0
    %180 = vmatpush2.bf16.msra.mxu0 0
    %181 = vmatprep.subr.bf16.mxu0 0
    %182 = vmatpush2.bf16.msra.mxu0 0
    %183 = vmatprep.subr.bf16.mxu0 0
    %184 = vmatpush2.bf16.msra.mxu0 0
    %185 = vmatprep.subr.bf16.mxu0 0
    %186 = vmatpush2.bf16.msra.mxu0 0
    %187 = vmatprep.subr.bf16.mxu0 0
    %188 = vmatpush2.bf16.msra.mxu0 0
    %189 = vmatprep.mubr.bf16.mxu0 0
    %190 = vmatmul.mubr.bf16.gmra.mxu0 %v85
    %v191 = vpop.f32.mrf.mxu0
    %v192 = vadd.f32 %v107, %v191
    %v193 = vpop.f32.mrf.mxu0
    %v194 = vpop.f32.mrf.mxu0
    %v195 = vadd.f32 %v107, %v194
    %v196 = vpop.f32.mrf.mxu0
    %197 = vdwg.mxu0
    %v198 = vmul.f32 %v192, %v192
    %v199 = vmul.f32 %v195, %v195
    %v200 = vmul.f32 %v192, %v198
    %v201 = vmul.f32 %v195, %v199
    %v202 = vmul.f32 %v200, 0.044715
    %v203 = vmul.f32 %v201, 0.044715
    %v204 = vadd.f32 %v192, %v202
    %v205 = vadd.f32 %v195, %v203
    %v206 = vmul.f32 %v204, 0.7978846
    %v207 = vmul.f32 %v205, 0.7978846
    %v208 = vtanh.pop %v206
    %v209 = vtanh.pop %v207
    %v210 = vadd.f32 %v208, 1.0
    %v211 = vadd.f32 %v209, 1.0
    %v212 = vmul.f32 %v210, 0.5
    %v213 = vmul.f32 %v211, 0.5
    %v214 = vmul.f32 %v192, %v212
    %v215 = vmul.f32 %v195, %v213
    %v216 = vpack.c.bf16 %v215, %v214
    %v217 = vld [vmem:[#allocation7] sm:$0xf]
    %v218 = vld [vmem:[#allocation7 + $0x4] sm:$0xf]
    %v219 = vld [vmem:[#allocation7 + $0x8] sm:$0xf]
    %v220 = vld [vmem:[#allocation7 + $0xc] sm:$0xf]
    %v221 = vld [vmem:[#allocation7 + $0x10] sm:$0xf]
    %v222 = vld [vmem:[#allocation7 + $0x14] sm:$0xf]
    %v223 = vld [vmem:[#allocation7 + $0x18] sm:$0xf]
    %v224 = vld [vmem:[#allocation7 + $0x1c] sm:$0xf]
    %v225 = vld [vmem:[#allocation7 + $0x20] sm:$0xf]
    %v226 = vld [vmem:[#allocation7 + $0x24] sm:$0xf]
    %v227 = vld [vmem:[#allocation7 + $0x28] sm:$0xf]
    %v228 = vld [vmem:[#allocation7 + $0x2c] sm:$0xf]
    %v229 = vld [vmem:[#allocation7 + $0x30] sm:$0xf]
    %v230 = vld [vmem:[#allocation7 + $0x34] sm:$0xf]
    %v231 = vld [vmem:[#allocation7 + $0x38] sm:$0xf]
    %v232 = vld [vmem:[#allocation7 + $0x3c] sm:$0xf]
    %v233 = vld [vmem:[%s4] sm:$0x1]
    %v235 = vlaneseq
    %v236 = vshrl.u32 %v235, 7
    %v237 = vsub.s32 0, %v236
    %v238 = vrot.slane %v233, %v237
    %v256 = vunpack.c.l.b16 %v217
    %v257 = vunpack.c.l.b16 %v218
    %v258 = vunpack.c.l.b16 %v219
    %v259 = vunpack.c.l.b16 %v220
    %v260 = vunpack.c.l.b16 %v221
    %v261 = vunpack.c.l.b16 %v222
    %v262 = vunpack.c.l.b16 %v223
    %v263 = vunpack.c.l.b16 %v224
    %v264 = vunpack.c.l.b16 %v225
    %v265 = vunpack.c.l.b16 %v226
    %v266 = vunpack.c.l.b16 %v227
    %v267 = vunpack.c.l.b16 %v228
    %v268 = vunpack.c.l.b16 %v229
    %v269 = vunpack.c.l.b16 %v230
    %v270 = vunpack.c.l.b16 %v231
    %v271 = vunpack.c.l.b16 %v232
    %v272 = vpack.c.b16 %v257, %v256
    %v273 = vpack.c.b16 %v259, %v258
    %v274 = vpack.c.b16 %v261, %v260
    %v275 = vpack.c.b16 %v263, %v262
    %v276 = vpack.c.b16 %v265, %v264
    %v277 = vpack.c.b16 %v267, %v266
    %v278 = vpack.c.b16 %v269, %v268
    %v279 = vpack.c.b16 %v271, %v270
    %288 = vmatprep.subr.bf16.mxu0 0
    %289 = vmatpush1.bf16.msra.mxu0 %v279
    %290 = vmatprep.subr.bf16.mxu0 0
    %291 = vmatpush1.bf16.msra.mxu0 %v278
    %292 = vmatprep.subr.bf16.mxu0 0
    %293 = vmatpush1.bf16.msra.mxu0 %v277
    %294 = vmatprep.subr.bf16.mxu0 0
    %295 = vmatpush1.bf16.msra.mxu0 %v276
    %296 = vmatprep.subr.bf16.mxu0 0
    %297 = vmatpush1.bf16.msra.mxu0 %v275
    %298 = vmatprep.subr.bf16.mxu0 0
    %299 = vmatpush1.bf16.msra.mxu0 %v274
    %300 = vmatprep.subr.bf16.mxu0 0
    %301 = vmatpush1.bf16.msra.mxu0 %v273
    %302 = vmatprep.subr.bf16.mxu0 0
    %303 = vmatpush1.bf16.msra.mxu0 %v272
    %304 = vmatprep.subr.bf16.mxu0 0
    %305 = vmatpush2.bf16.msra.mxu0 0
    %306 = vmatprep.subr.bf16.mxu0 0
    %307 = vmatpush2.bf16.msra.mxu0 0
    %308 = vmatprep.subr.bf16.mxu0 0
    %309 = vmatpush2.bf16.msra.mxu0 0
    %310 = vmatprep.subr.bf16.mxu0 0
    %311 = vmatpush2.bf16.msra.mxu0 0
    %312 = vmatprep.subr.bf16.mxu0 0
    %313 = vmatpush2.bf16.msra.mxu0 0
    %314 = vmatprep.subr.bf16.mxu0 0
    %315 = vmatpush2.bf16.msra.mxu0 0
    %316 = vmatprep.subr.bf16.mxu0 0
    %317 = vmatpush2.bf16.msra.mxu0 0
    %318 = vmatprep.subr.bf16.mxu0 0
    %319 = vmatpush2.bf16.msra.mxu0 0
    %320 = vmatprep.mubr.bf16.mxu0 0
    %321 = vmatmul.mubr.bf16.gmra.mxu0 %v216
    %v322 = vpop.f32.mrf.mxu0
    %v323 = vadd.f32 %v238, %v322
    %v324 = vpop.f32.mrf.mxu0
    %v325 = vpop.f32.mrf.mxu0
    %v326 = vadd.f32 %v238, %v325
    %v327 = vpop.f32.mrf.mxu0
    %328 = vdwg.mxu0
    %v329 = vmul.f32 %v323, %v323
    %v330 = vmul.f32 %v326, %v326
    %v331 = vmul.f32 %v323, %v329
    %v332 = vmul.f32 %v326, %v330
    %v333 = vmul.f32 %v331, 0.044715
    %v334 = vmul.f32 %v332, 0.044715
    %v335 = vadd.f32 %v323, %v333
    %v336 = vadd.f32 %v326, %v334
    %v337 = vmul.f32 %v335, 0.7978846
    %v338 = vmul.f32 %v336, 0.7978846
    %v339 = vtanh.pop %v337
    %v340 = vtanh.pop %v338
    %v341 = vadd.f32 %v339, 1.0
    %v342 = vadd.f32 %v340, 1.0
    %v343 = vmul.f32 %v341, 0.5
    %v344 = vmul.f32 %v342, 0.5
    %v345 = vmul.f32 %v323, %v343
    %v346 = vmul.f32 %v326, %v344
    %v347 = vpack.c.bf16 %v346, %v345
    %v348 = vld [vmem:[#allocation8] sm:$0xf]
    %v349 = vld [vmem:[#allocation8 + $0x4] sm:$0xf]
    %v350 = vld [vmem:[#allocation8 + $0x8] sm:$0xf]
    %v351 = vld [vmem:[#allocation8 + $0xc] sm:$0xf]
    %v352 = vld [vmem:[#allocation8 + $0x10] sm:$0xf]
    %v353 = vld [vmem:[#allocation8 + $0x14] sm:$0xf]
    %v354 = vld [vmem:[#allocation8 + $0x18] sm:$0xf]
    %v355 = vld [vmem:[#allocation8 + $0x1c] sm:$0xf]
    %v356 = vld [vmem:[#allocation8 + $0x20] sm:$0xf]
    %v357 = vld [vmem:[#allocation8 + $0x24] sm:$0xf]
    %v358 = vld [vmem:[#allocation8 + $0x28] sm:$0xf]
    %v359 = vld [vmem:[#allocation8 + $0x2c] sm:$0xf]
    %v360 = vld [vmem:[#allocation8 + $0x30] sm:$0xf]
    %v361 = vld [vmem:[#allocation8 + $0x34] sm:$0xf]
    %v362 = vld [vmem:[#allocation8 + $0x38] sm:$0xf]
    %v363 = vld [vmem:[#allocation8 + $0x3c] sm:$0xf]
    %v364 = vld [vmem:[%s6] sm:$0x1]
    %v366 = vlaneseq
    %v367 = vshrl.u32 %v366, 7
    %v368 = vsub.s32 0, %v367
    %v369 = vrot.slane %v364, %v368
    %v387 = vunpack.c.l.b16 %v348
    %v388 = vunpack.c.l.b16 %v349
    %v389 = vunpack.c.l.b16 %v350
    %v390 = vunpack.c.l.b16 %v351
    %v391 = vunpack.c.l.b16 %v352
    %v392 = vunpack.c.l.b16 %v353
    %v393 = vunpack.c.l.b16 %v354
    %v394 = vunpack.c.l.b16 %v355
    %v395 = vunpack.c.l.b16 %v356
    %v396 = vunpack.c.l.b16 %v357
    %v397 = vunpack.c.l.b16 %v358
    %v398 = vunpack.c.l.b16 %v359
    %v399 = vunpack.c.l.b16 %v360
    %v400 = vunpack.c.l.b16 %v361
    %v401 = vunpack.c.l.b16 %v362
    %v402 = vunpack.c.l.b16 %v363
    %v403 = vpack.c.b16 %v388, %v387
    %v404 = vpack.c.b16 %v390, %v389
    %v405 = vpack.c.b16 %v392, %v391
    %v406 = vpack.c.b16 %v394, %v393
    %v407 = vpack.c.b16 %v396, %v395
    %v408 = vpack.c.b16 %v398, %v397
    %v409 = vpack.c.b16 %v400, %v399
    %v410 = vpack.c.b16 %v402, %v401
    %419 = vmatprep.subr.bf16.mxu0 0
    %420 = vmatpush1.bf16.msra.mxu0 %v410
    %421 = vmatprep.subr.bf16.mxu0 0
    %422 = vmatpush1.bf16.msra.mxu0 %v409
    %423 = vmatprep.subr.bf16.mxu0 0
    %424 = vmatpush1.bf16.msra.mxu0 %v408
    %425 = vmatprep.subr.bf16.mxu0 0
    %426 = vmatpush1.bf16.msra.mxu0 %v407
    %427 = vmatprep.subr.bf16.mxu0 0
    %428 = vmatpush1.bf16.msra.mxu0 %v406
    %429 = vmatprep.subr.bf16.mxu0 0
    %430 = vmatpush1.bf16.msra.mxu0 %v405
    %431 = vmatprep.subr.bf16.mxu0 0
    %432 = vmatpush1.bf16.msra.mxu0 %v404
    %433 = vmatprep.subr.bf16.mxu0 0
    %434 = vmatpush1.bf16.msra.mxu0 %v403
    %435 = vmatprep.subr.bf16.mxu0 0
    %436 = vmatpush2.bf16.msra.mxu0 0
    %437 = vmatprep.subr.bf16.mxu0 0
    %438 = vmatpush2.bf16.msra.mxu0 0
    %439 = vmatprep.subr.bf16.mxu0 0
    %440 = vmatpush2.bf16.msra.mxu0 0
    %441 = vmatprep.subr.bf16.mxu0 0
    %442 = vmatpush2.bf16.msra.mxu0 0
    %443 = vmatprep.subr.bf16.mxu0 0
    %444 = vmatpush2.bf16.msra.mxu0 0
    %445 = vmatprep.subr.bf16.mxu0 0
    %446 = vmatpush2.bf16.msra.mxu0 0
    %447 = vmatprep.subr.bf16.mxu0 0
    %448 = vmatpush2.bf16.msra.mxu0 0
    %449 = vmatprep.subr.bf16.mxu0 0
    %450 = vmatpush2.bf16.msra.mxu0 0
    %451 = vmatprep.mubr.bf16.mxu0 0
    %452 = vmatmul.mubr.bf16.gmra.mxu0 %v347
    %v453 = vpop.f32.mrf.mxu0
    %v454 = vadd.f32 %v369, %v453
    %v455 = vpop.f32.mrf.mxu0
    %v456 = vpop.f32.mrf.mxu0
    %v457 = vadd.f32 %v369, %v456
    %v458 = vpop.f32.mrf.mxu0
    %459 = vdwg.mxu0
    %460 = vst [vmem:[#allocation10] sm:$0xff] %v454
    %461 = vst [vmem:[#allocation10 + $0x8] sm:$0xff] %v457
    // Predicated region
    $region46: #{tpu_custom_call.1} parent=1 // pred_check
      _
    $region47: #{tpu_custom_call.1} parent=1 // pred_check_branch
      %463 = sbr.rel (0) target = $region49
    $region48: #{tpu_custom_call.1} parent=1 // pred_region
      %s465 = ssub.s32 256, 256
      %466 = vsyncadd [#allocation4], %s465
      %s467 = sshll.u32 [#allocation10], 4
      %s468 = int_to_ptr.vmem [resolvable:$true] %s467
      %473 = dma.vmem_to_hbm [thread:$0]  %s468, 256, %s7, [#allocation4], 128, 128, 8
    $region49: #{tpu_custom_call.1} parent=1 // pred_fallthru
      _
    // Predicated region
    $region50: #{tpu_custom_call.1} parent=1 // pred_check
      _
    $region51: #{tpu_custom_call.1} parent=1 // pred_check_branch
      %475 = sbr.rel (0) target = $region53
    $region52: #{tpu_custom_call.1} parent=1 // pred_region
      %476 = dma.done [#allocation4], 256
    $region53: #{tpu_custom_call.1} parent=1 // pred_fallthru
      _
    %477 = vsyncpa [#allocation3], 1
    %478 = vsyncpa [#allocation6], 1
    %479 = vsyncpa [#allocation9], 1
    %480 = vsyncpa [#allocation4], 1

</llo_original>
